<compile_context>
chip_gen: v7x
topology: tpu7x:2x2x1
jax: 0.10.0
libtpu: 0.0.40
codegen_flags: <defaults>
</compile_context>

<pallas_src>
import math
from functools import partial

import jax
import jax.numpy as jnp
from jax import lax
from jax.experimental import pallas as pl
from jax.experimental.pallas import tpu as pltpu


_MASK_VALUE = -1e30                 # finite "minus infinity" for padded KV columns
_VMEM_LIMIT = 48 * 1024 * 1024      # <= v7x's 64 MiB physical; > v5e/v6e scoped default


def _round_up(x: int, m: int) -> int:
    return ((x + m - 1) // m) * m


# --------------------------------------------------------------------------- #
# 1) Fused Q/K/V projection: runs ONCE over x; weights are grid-invariant.
# --------------------------------------------------------------------------- #
def _qkv_projection_kernel(x_ref, wq_ref, wk_ref, wv_ref, q_ref, k_ref, v_ref,
                           *, norm_fact):
    # x @ W.T with no transpose: contract dim_in (axis 1) of both operands.
    dn = (((1,), (1,)), ((), ()))
    x = x_ref[...]                                                  # bf16 (bn, din_p)
    q = lax.dot_general(x, wq_ref[...], dn, preferred_element_type=jnp.float32)
    k = lax.dot_general(x, wk_ref[...], dn, preferred_element_type=jnp.float32)
    v = lax.dot_general(x, wv_ref[...], dn, preferred_element_type=jnp.float32)
    q_ref[...] = (q * norm_fact).astype(q_ref.dtype)   # fold 1/sqrt(dim_k) into q
    k_ref[...] = k.astype(k_ref.dtype)
    v_ref[...] = v.astype(v_ref.dtype)


# --------------------------------------------------------------------------- #
# 2) Flash attention over precomputed (scaled) Q, K, V.
# --------------------------------------------------------------------------- #
def _flash_attention_kernel(*refs, has_bias):
    if has_bias:
        q_ref, k_ref, v_ref, bias_ref, o_ref, m_sc, l_sc, acc_sc = refs
    else:
        q_ref, k_ref, v_ref, o_ref, m_sc, l_sc, acc_sc = refs
        bias_ref = None
    ki = pl.program_id(1)

    @pl.when(ki == 0)
    def _():
        m_sc[...] = jnp.full(m_sc.shape, -jnp.inf, jnp.float32)
        l_sc[...] = jnp.zeros(l_sc.shape, jnp.float32)
        acc_sc[...] = jnp.zeros(acc_sc.shape, jnp.float32)

    # scores = (q / sqrt(dk)) @ k.T : contraction over dim_k, bf16 in / f32 acc.
    s = lax.dot_general(q_ref[...], k_ref[...], (((1,), (1,)), ((), ())),
                        preferred_element_type=jnp.float32)        # (bq, bkv) f32
    if has_bias:
        s = s + bias_ref[...]       # streamed additive mask: single VPU add per element

    # ---- online-softmax (flash) accumulation, all f32
    m_prev = m_sc[...]                                  # (bq, 128), all lanes identical
    s_max = jnp.max(s, axis=-1, keepdims=True)          # (bq, 1)
    m_new = jnp.maximum(m_prev, s_max)                  # (bq, 128)
    m_new_c = m_new[:, :1]                              # (bq, 1)
    alpha = jnp.exp(m_prev[:, :1] - m_new_c)            # (bq, 1)  -- only bq exps
    p = jnp.exp(s - m_new_c)                            # (bq, bkv)
    l_sc[...] = alpha * l_sc[...] + jnp.sum(p, axis=-1, keepdims=True)
    acc_sc[...] = alpha * acc_sc[...] + jnp.dot(
        p.astype(v_ref.dtype), v_ref[...], preferred_element_type=jnp.float32)
    m_sc[...] = m_new

    # ---- finalize on last KV tile
    @pl.when(ki == pl.num_programs(1) - 1)
    def _():
        inv_l = pl.reciprocal(l_sc[...], approx=True)[:, :1]   # EUP vrcp, once per tile
        o_ref[...] = (acc_sc[...] * inv_l).astype(o_ref.dtype)


def self_attention_pallas(x, wq, wk, wv, *, max_block=512):
    """x: (n, dim_in); wq/wk: (dim_k, dim_in); wv: (dim_v, dim_in) — PyTorch Linear layout."""
    n, dim_in = x.shape
    dim_k = wq.shape[0]
    dim_v = wv.shape[0]
    assert max_block % 128 == 0, "max_block must be a multiple of 128 (lane-dense tiles)"
    norm_fact = 1.0 / math.sqrt(dim_k)

    # Lane-dense padding: feature dims -> multiples of 128; n -> multiple of 8 / block.
    dim_in_p = _round_up(dim_in, 128)
    dim_k_p = _round_up(dim_k, 128)
    dim_v_p = _round_up(dim_v, 128)

    n_pad = _round_up(n, 8)
    if n_pad <= max_block:
        block_kv = n_pad
        # Split q tiles in two when possible so the "parallel" axis has >=2
        # iterations (sharding across v7x's two TensorCores).
        block_q = n_pad // 2 if (n_pad % 16 == 0) else n_pad
    else:
        block_q = block_kv = max_block
        n_pad = _round_up(n, max_block)
    assert n_pad % block_q == 0 and n_pad % block_kv == 0
    assert n_pad - n < block_kv, "last KV tile must contain at least one valid column"

    bf16 = jnp.bfloat16
    x_p = jnp.zeros((n_pad, dim_in_p), bf16).at[:n, :dim_in].set(x.astype(bf16))
    wq_p = jnp.zeros((dim_k_p, dim_in_p), bf16).at[:dim_k, :dim_in].set(wq.astype(bf16))
    wk_p = jnp.zeros((dim_k_p, dim_in_p), bf16).at[:dim_k, :dim_in].set(wk.astype(bf16))
    wv_p = jnp.zeros((dim_v_p, dim_in_p), bf16).at[:dim_v, :dim_in].set(wv.astype(bf16))

    vmem = pltpu.MemorySpace.VMEM

    # ---------------- projection pallas_call (once over x) ----------------
    proj_grid = (n_pad // block_q,)
    proj_cost = pl.CostEstimate(
        flops=2 * n_pad * dim_in_p * (2 * dim_k_p + dim_v_p),
        transcendentals=0,
        bytes_accessed=2 * (x_p.size + wq_p.size + wk_p.size + wv_p.size
                            + n_pad * (2 * dim_k_p + dim_v_p)),
    )
    q_p, k_p, v_p = pl.pallas_call(
        partial(_qkv_projection_kernel, norm_fact=norm_fact),
        out_shape=(jax.ShapeDtypeStruct((n_pad, dim_k_p), bf16),
                   jax.ShapeDtypeStruct((n_pad, dim_k_p), bf16),
                   jax.ShapeDtypeStruct((n_pad, dim_v_p), bf16)),
        grid_spec=pltpu.PrefetchScalarGridSpec(
            num_scalar_prefetch=0,
            grid=proj_grid,
            in_specs=[
                pl.BlockSpec((block_q, dim_in_p), lambda i: (i, 0), memory_space=vmem),
                # Weight blocks are grid-invariant (constant index_map): fetched once.
                pl.BlockSpec((dim_k_p, dim_in_p), lambda i: (0, 0), memory_space=vmem),
                pl.BlockSpec((dim_k_p, dim_in_p), lambda i: (0, 0), memory_space=vmem),
                pl.BlockSpec((dim_v_p, dim_in_p), lambda i: (0, 0), memory_space=vmem),
            ],
            out_specs=(
                pl.BlockSpec((block_q, dim_k_p), lambda i: (i, 0), memory_space=vmem),
                pl.BlockSpec((block_q, dim_k_p), lambda i: (i, 0), memory_space=vmem),
                pl.BlockSpec((block_q, dim_v_p), lambda i: (i, 0), memory_space=vmem),
            ),
        ),
        compiler_params=pltpu.CompilerParams(
            dimension_semantics=("parallel",),
            vmem_limit_bytes=_VMEM_LIMIT,
        ),
        cost_estimate=proj_cost,
    )(x_p, wq_p, wk_p, wv_p)

    # ---------------- flash attention pallas_call ----------------
    grid = (n_pad // block_q, n_pad // block_kv)
    has_bias = n_pad > n

    in_specs = [
        pl.BlockSpec((block_q, dim_k_p), lambda qi, ki: (qi, 0), memory_space=vmem),
        pl.BlockSpec((block_kv, dim_k_p), lambda qi, ki: (ki, 0), memory_space=vmem),
        pl.BlockSpec((block_kv, dim_v_p), lambda qi, ki: (ki, 0), memory_space=vmem),
    ]
    args = [q_p, k_p, v_p]
    if has_bias:
        bias = jnp.where(jnp.arange(n_pad) < n, 0.0, _MASK_VALUE)
        bias = bias.astype(jnp.float32).reshape(1, n_pad)
        in_specs.append(
            pl.BlockSpec((1, block_kv), lambda qi, ki: (0, ki), memory_space=vmem))
        args.append(bias)

    attn_cost = pl.CostEstimate(
        flops=2 * n_pad * n_pad * (dim_k_p + dim_v_p),
        transcendentals=n_pad * n_pad,
        bytes_accessed=2 * (n_pad * dim_k_p
                            + grid[0] * n_pad * (dim_k_p + dim_v_p))
                       + 4 * n_pad * dim_v_p,
    )

    out_p = pl.pallas_call(
        partial(_flash_attention_kernel, has_bias=has_bias),
        out_shape=jax.ShapeDtypeStruct((n_pad, dim_v_p), x.dtype),
        grid_spec=pltpu.PrefetchScalarGridSpec(
            num_scalar_prefetch=0,
            grid=grid,
            in_specs=in_specs,
            out_specs=pl.BlockSpec((block_q, dim_v_p), lambda qi, ki: (qi, 0),
                                   memory_space=vmem),
            scratch_shapes=[
                pltpu.VMEM((block_q, 128), jnp.float32),      # running max m (lane-dense)
                pltpu.VMEM((block_q, 128), jnp.float32),      # running denom l (lane-dense)
                pltpu.VMEM((block_q, dim_v_p), jnp.float32),  # output accumulator
            ],
        ),
        compiler_params=pltpu.CompilerParams(
            dimension_semantics=("parallel", "arbitrary"),
            vmem_limit_bytes=_VMEM_LIMIT,
        ),
        cost_estimate=attn_cost,
    )(*args)

    return out_p[:n, :dim_v]


def self_attention_ref(x, wq, wk, wv):
    """Pure-JAX f32 reference matching the PyTorch forward exactly."""
    dim_k = wq.shape[0]
    q = x @ wq.T
    k = x @ wk.T
    v = x @ wv.T
    dist = (q @ k.T) / math.sqrt(dim_k)
    dist = jax.nn.softmax(dist, axis=-1)
    return dist @ v


if __name__ == "__main__":
    # Small shapes consistent with the forward: x is (n, dim_in)
    n, dim_in, dim_k, dim_v = 8, 32, 16, 16

    key = jax.random.PRNGKey(0)
    kx, kq, kk, kv, kx2 = jax.random.split(key, 5)

    x = jax.random.normal(kx, (n, dim_in), dtype=jnp.float32)
    # PyTorch Linear layout (out_features, in_features), default-init-like weights.
    bound = 1.0 / math.sqrt(dim_in)
    wq = jax.random.uniform(kq, (dim_k, dim_in), jnp.float32, -bound, bound)
    wk = jax.random.uniform(kk, (dim_k, dim_in), jnp.float32, -bound, bound)
    wv = jax.random.uniform(kv, (dim_v, dim_in), jnp.float32, -bound, bound)

    # Single-tile path (no padding bias).
    out = jax.block_until_ready(self_attention_pallas(x, wq, wk, wv))
    ref = self_attention_ref(x, wq, wk, wv)
    assert out.shape == (n, dim_v)
    # bf16 MXU operands (f32 accumulation) + approx reciprocal -> loose tolerance.
    assert jnp.allclose(out, ref, atol=2e-2, rtol=2e-2), "mismatch vs reference (single block)"

    # Gridded flash path: multiple q / kv tiles + streamed padded-KV bias mask.
    n2 = 300
    x2 = jax.random.normal(kx2, (n2, dim_in), dtype=jnp.float32)
    out2 = jax.block_until_ready(self_attention_pallas(x2, wq, wk, wv, max_block=128))
    ref2 = self_attention_ref(x2, wq, wk, wv)
    assert out2.shape == (n2, dim_v)
    assert jnp.allclose(out2, ref2, atol=2e-2, rtol=2e-2), "mismatch vs reference (gridded)"

    print("KERNEL_OK")
</pallas_src>

<mosaic_0001>
module attributes {stable_mosaic.version = 11 : i64} {
  func.func @_qkv_projection_kernel(%arg0: i32, %arg1: memref<8x128xbf16, #tpu.memory_space<vmem>>, %arg2: memref<128x128xbf16, #tpu.memory_space<vmem>>, %arg3: memref<128x128xbf16, #tpu.memory_space<vmem>>, %arg4: memref<128x128xbf16, #tpu.memory_space<vmem>>, %arg5: memref<8x128xbf16, #tpu.memory_space<vmem>>, %arg6: memref<8x128xbf16, #tpu.memory_space<vmem>>, %arg7: memref<8x128xbf16, #tpu.memory_space<vmem>>) attributes {dimension_semantics = [#tpu.dimension_semantics<parallel>], iteration_bounds = array<i64: 1>, scalar_prefetch = 0 : i64, scratch_operands = 0 : i64, tpu.core_type = #tpu.core_type<tc>, window_params = [{transform_indices = @transform_0, window_bounds = array<i64: 8, 128>}, {pipeline_mode = #tpu.pipeline_mode<synchronous>, transform_indices = @transform_1, window_bounds = array<i64: 128, 128>}, {pipeline_mode = #tpu.pipeline_mode<synchronous>, transform_indices = @transform_2, window_bounds = array<i64: 128, 128>}, {pipeline_mode = #tpu.pipeline_mode<synchronous>, transform_indices = @transform_3, window_bounds = array<i64: 128, 128>}, {transform_indices = @transform_4, window_bounds = array<i64: 8, 128>}, {transform_indices = @transform_5, window_bounds = array<i64: 8, 128>}, {transform_indices = @transform_6, window_bounds = array<i64: 8, 128>}]} {
    %c0 = arith.constant 0 : index
    %c0_0 = arith.constant 0 : index
    %0 = vector.load %arg1[%c0, %c0_0] : memref<8x128xbf16, #tpu.memory_space<vmem>>, vector<8x128xbf16>
    %c0_1 = arith.constant 0 : index
    %c0_2 = arith.constant 0 : index
    %1 = vector.load %arg2[%c0_1, %c0_2] : memref<128x128xbf16, #tpu.memory_space<vmem>>, vector<128x128xbf16>
    %cst = arith.constant dense<0.000000e+00> : vector<8x128xf32>
    %2 = tpu.matmul %0, %1, %cst {dimension_numbers = #tpu.dot_dimension_numbers<[1], [1], [0], [0], [0, 0, 1, 0], [], []>} : vector<8x128xbf16>, vector<128x128xbf16>, vector<8x128xf32> -> vector<8x128xf32>
    %c0_3 = arith.constant 0 : index
    %c0_4 = arith.constant 0 : index
    %3 = vector.load %arg3[%c0_3, %c0_4] : memref<128x128xbf16, #tpu.memory_space<vmem>>, vector<128x128xbf16>
    %cst_5 = arith.constant dense<0.000000e+00> : vector<8x128xf32>
    %4 = tpu.matmul %0, %3, %cst_5 {dimension_numbers = #tpu.dot_dimension_numbers<[1], [1], [0], [0], [0, 0, 1, 0], [], []>} : vector<8x128xbf16>, vector<128x128xbf16>, vector<8x128xf32> -> vector<8x128xf32>
    %c0_6 = arith.constant 0 : index
    %c0_7 = arith.constant 0 : index
    %5 = vector.load %arg4[%c0_6, %c0_7] : memref<128x128xbf16, #tpu.memory_space<vmem>>, vector<128x128xbf16>
    %cst_8 = arith.constant dense<0.000000e+00> : vector<8x128xf32>
    %6 = tpu.matmul %0, %5, %cst_8 {dimension_numbers = #tpu.dot_dimension_numbers<[1], [1], [0], [0], [0, 0, 1, 0], [], []>} : vector<8x128xbf16>, vector<128x128xbf16>, vector<8x128xf32> -> vector<8x128xf32>
    %cst_9 = arith.constant 2.500000e-01 : f32
    %7 = vector.broadcast %cst_9 : f32 to vector<8x128xf32>
    %8 = arith.mulf %2, %7 : vector<8x128xf32>
    %9 = arith.truncf %8 : vector<8x128xf32> to vector<8x128xbf16>
    %c0_10 = arith.constant 0 : index
    %c0_11 = arith.constant 0 : index
    %10 = vector.load %arg5[%c0_10, %c0_11] : memref<8x128xbf16, #tpu.memory_space<vmem>>, vector<8x128xbf16>
    tpu.vector_store %arg5[%c0_10, %c0_11], %9 {strides = array<i32>} : memref<8x128xbf16, #tpu.memory_space<vmem>>, vector<8x128xbf16>,
    %11 = arith.truncf %4 : vector<8x128xf32> to vector<8x128xbf16>
    %c0_12 = arith.constant 0 : index
    %c0_13 = arith.constant 0 : index
    %12 = vector.load %arg6[%c0_12, %c0_13] : memref<8x128xbf16, #tpu.memory_space<vmem>>, vector<8x128xbf16>
    tpu.vector_store %arg6[%c0_12, %c0_13], %11 {strides = array<i32>} : memref<8x128xbf16, #tpu.memory_space<vmem>>, vector<8x128xbf16>,
    %13 = arith.truncf %6 : vector<8x128xf32> to vector<8x128xbf16>
    %c0_14 = arith.constant 0 : index
    %c0_15 = arith.constant 0 : index
    %14 = vector.load %arg7[%c0_14, %c0_15] : memref<8x128xbf16, #tpu.memory_space<vmem>>, vector<8x128xbf16>
    tpu.vector_store %arg7[%c0_14, %c0_15], %13 {strides = array<i32>} : memref<8x128xbf16, #tpu.memory_space<vmem>>, vector<8x128xbf16>,
    return
  }
  func.func @transform_0(%arg0: i32) -> (i32, i32) {
    %c0_i32 = arith.constant 0 : i32
    %c0_i32_0 = arith.constant 0 : i32
    return %arg0, %c0_i32 : i32, i32
  }
  func.func @transform_1(%arg0: i32) -> (i32, i32) {
    %c0_i32 = arith.constant 0 : i32
    %c0_i32_0 = arith.constant 0 : i32
    %c0_i32_1 = arith.constant 0 : i32
    return %c0_i32, %c0_i32_0 : i32, i32
  }
  func.func @transform_2(%arg0: i32) -> (i32, i32) {
    %c0_i32 = arith.constant 0 : i32
    %c0_i32_0 = arith.constant 0 : i32
    %c0_i32_1 = arith.constant 0 : i32
    return %c0_i32, %c0_i32_0 : i32, i32
  }
  func.func @transform_3(%arg0: i32) -> (i32, i32) {
    %c0_i32 = arith.constant 0 : i32
    %c0_i32_0 = arith.constant 0 : i32
    %c0_i32_1 = arith.constant 0 : i32
    return %c0_i32, %c0_i32_0 : i32, i32
  }
  func.func @transform_4(%arg0: i32) -> (i32, i32) {
    %c0_i32 = arith.constant 0 : i32
    %c0_i32_0 = arith.constant 0 : i32
    return %arg0, %c0_i32 : i32, i32
  }
  func.func @transform_5(%arg0: i32) -> (i32, i32) {
    %c0_i32 = arith.constant 0 : i32
    %c0_i32_0 = arith.constant 0 : i32
    return %arg0, %c0_i32 : i32, i32
  }
  func.func @transform_6(%arg0: i32) -> (i32, i32) {
    %c0_i32 = arith.constant 0 : i32
    %c0_i32_0 = arith.constant 0 : i32
    return %arg0, %c0_i32 : i32, i32
  }
}

</mosaic_0001>

<llo_original>
// kernel: tpu_custom_call.1
$region0: #{tpu_custom_call.1}
  #allocation0 [shape = 'u32[]', space=smem, size = 0x4, offset = 0x4, fixed_abs, tag = 'smem constant byte address 0x4 - core index']
  #allocation1 [shape = 'u32[144,128]{1,0:T(1,128)}', space=vmem, size = 0x12000, scoped, tag = 'internal scratch']
  %s0 = inlined_call_operand.hbm [shape: bf16[8,128], index: 0, kind: input, shape index: {}]
  %s1 = inlined_call_operand.hbm [shape: bf16[128,128], index: 1, kind: input, shape index: {}]
  %s2 = inlined_call_operand.hbm [shape: bf16[128,128], index: 2, kind: input, shape index: {}]
  %s3 = inlined_call_operand.hbm [shape: bf16[128,128], index: 3, kind: input, shape index: {}]
  %s4 = inlined_call_operand.hbm [shape: bf16[8,128], index: 4, kind: output, shape index: {0}]
  %s5 = inlined_call_operand.hbm [shape: bf16[8,128], index: 5, kind: output, shape index: {1}]
  %s6 = inlined_call_operand.hbm [shape: bf16[8,128], index: 6, kind: output, shape index: {2}]
  %7 = xla_tuple %s4, %s5, %s6
  %s8 = sld [smem:[#allocation0]]
  $region58: #{tpu_custom_call.1} parent=0
    _
  %s10 = ssub.s32 1, %s8
  %s11 = scalar_select 0, %s10, %s8
  $region1: #{tpu_custom_call.1} parent=0
    #allocation2 [shape = 'u8[2048]{0}', space=vmem, size = 0x800, scoped, tag = 'input window, operand 0, single buffered']
    #allocation3 [shape = 's32[1]{0}', space=sflag, size = 0x4, scoped, tag = 'scoped memory for tpu_custom_call.1']
    #allocation4 [shape = 's32[1]{0}', space=sflag, size = 0x4, scoped, tag = 'scoped memory for tpu_custom_call.1']
    #allocation5 [shape = 'u8[32768]{0}', space=vmem, size = 0x8000, scoped, tag = 'input window, operand 1, single buffered']
    #allocation6 [shape = 's32[1]{0}', space=sflag, size = 0x4, scoped, tag = 'scoped memory for tpu_custom_call.1']
    #allocation7 [shape = 'u8[32768]{0}', space=vmem, size = 0x8000, scoped, tag = 'input window, operand 2, single buffered']
    #allocation8 [shape = 'u8[32768]{0}', space=vmem, size = 0x8000, scoped, tag = 'input window, operand 3, single buffered']
    #allocation9 [shape = 's32[1]{0}', space=sflag, size = 0x4, scoped, tag = 'scoped memory for tpu_custom_call.1']
    #allocation10 [shape = 'u8[2048]{0}', space=vmem, size = 0x800, scoped, tag = 'output window, operand 0, single buffered']
    #allocation11 [shape = 'u8[2048]{0}', space=vmem, size = 0x800, scoped, tag = 'output window, operand 1, single buffered']
    #allocation12 [shape = 's32[1]{0}', space=sflag, size = 0x4, scoped, tag = 'scoped memory for tpu_custom_call.1']
    #allocation13 [shape = 'u8[2048]{0}', space=vmem, size = 0x800, scoped, tag = 'output window, operand 2, single buffered']
    %12 = vsyncpa [#allocation3], 0
    %13 = vsyncpa [#allocation6], 0
    %14 = vsyncpa [#allocation9], 0
    %15 = vsyncpa [#allocation4], 0
    %16 = vsyncpa [#allocation12], 0
    // Predicated region
    $region2: #{tpu_custom_call.1} parent=1 // pred_check
      _
    $region3: #{tpu_custom_call.1} parent=1 // pred_check_branch
      %18 = sbr.rel (0) target = $region5
    $region4: #{tpu_custom_call.1} parent=1 // pred_region
      %s20 = ssub.s32 64, 64
      %21 = vsyncadd [#allocation3], %s20
      %s23 = sshll.u32 [#allocation2], 4
      %s24 = int_to_ptr.vmem [resolvable:$true] %s23
      %26 = dma.hbm_to_vmem [thread:$0]  %s0, 64, %s24, [#allocation3]
    $region5: #{tpu_custom_call.1} parent=1 // pred_fallthru
      _
    // Predicated region
    $region6: #{tpu_custom_call.1} parent=1 // pred_check
      _
    $region7: #{tpu_custom_call.1} parent=1 // pred_check_branch
      %28 = sbr.rel (0) target = $region9
    $region8: #{tpu_custom_call.1} parent=1 // pred_region
      %s30 = ssub.s32 1024, 1024
      %31 = vsyncadd [#allocation6], %s30
      %s32 = sshll.u32 [#allocation5], 4
      %s33 = int_to_ptr.vmem [resolvable:$true] %s32
      %38 = dma.hbm_to_vmem [thread:$0]  %s1, 1024, %s33, [#allocation6], 64, 64, 4
    $region9: #{tpu_custom_call.1} parent=1 // pred_fallthru
      _
    // Predicated region
    $region10: #{tpu_custom_call.1} parent=1 // pred_check
      _
    $region11: #{tpu_custom_call.1} parent=1 // pred_check_branch
      %40 = sbr.rel (0) target = $region13
    $region12: #{tpu_custom_call.1} parent=1 // pred_region
      %s42 = ssub.s32 1024, 1024
      %43 = vsyncadd [#allocation6], %s42
      %s44 = sshll.u32 [#allocation7], 4
      %s45 = int_to_ptr.vmem [resolvable:$true] %s44
      %50 = dma.hbm_to_vmem [thread:$0]  %s2, 1024, %s45, [#allocation6], 64, 64, 4
    $region13: #{tpu_custom_call.1} parent=1 // pred_fallthru
      _
    // Predicated region
    $region14: #{tpu_custom_call.1} parent=1 // pred_check
      _
    $region15: #{tpu_custom_call.1} parent=1 // pred_check_branch
      %52 = sbr.rel (0) target = $region17
    $region16: #{tpu_custom_call.1} parent=1 // pred_region
      %s54 = ssub.s32 1024, 1024
      %55 = vsyncadd [#allocation9], %s54
      %s56 = sshll.u32 [#allocation8], 4
      %s57 = int_to_ptr.vmem [resolvable:$true] %s56
      %62 = dma.hbm_to_vmem [thread:$0]  %s3, 1024, %s57, [#allocation9], 64, 64, 4
    $region17: #{tpu_custom_call.1} parent=1 // pred_fallthru
      _
    // Predicated region
    $region18: #{tpu_custom_call.1} parent=1 // pred_check
      _
    $region19: #{tpu_custom_call.1} parent=1 // pred_check_branch
      %64 = sbr.rel (0) target = $region21
    $region20: #{tpu_custom_call.1} parent=1 // pred_region
      %65 = dma.done [#allocation3], 64
    $region21: #{tpu_custom_call.1} parent=1 // pred_fallthru
      _
    // Predicated region
    $region22: #{tpu_custom_call.1} parent=1 // pred_check
      _
    $region23: #{tpu_custom_call.1} parent=1 // pred_check_branch
      %67 = sbr.rel (0) target = $region25
    $region24: #{tpu_custom_call.1} parent=1 // pred_region
      %68 = dma.done [#allocation6], 1024
    $region25: #{tpu_custom_call.1} parent=1 // pred_fallthru
      _
    // Predicated region
    $region26: #{tpu_custom_call.1} parent=1 // pred_check
      _
    $region27: #{tpu_custom_call.1} parent=1 // pred_check_branch
      %70 = sbr.rel (0) target = $region29
    $region28: #{tpu_custom_call.1} parent=1 // pred_region
      %71 = dma.done [#allocation6], 1024
    $region29: #{tpu_custom_call.1} parent=1 // pred_fallthru
      _
    // Predicated region
    $region30: #{tpu_custom_call.1} parent=1 // pred_check
      _
    $region31: #{tpu_custom_call.1} parent=1 // pred_check_branch
      %73 = sbr.rel (0) target = $region33
    $region32: #{tpu_custom_call.1} parent=1 // pred_region
      %74 = dma.done [#allocation9], 1024
    $region33: #{tpu_custom_call.1} parent=1 // pred_fallthru
      _
    %v76 = vld [vmem:[#allocation2] sm:$0xf]
    %v77 = vld [vmem:[#allocation5] sm:$0xf]
    %v78 = vld [vmem:[#allocation5 + $0x4] sm:$0xf]
    %v79 = vld [vmem:[#allocation5 + $0x8] sm:$0xf]
    %v80 = vld [vmem:[#allocation5 + $0xc] sm:$0xf]
    %v81 = vld [vmem:[#allocation5 + $0x10] sm:$0xf]
    %v82 = vld [vmem:[#allocation5 + $0x14] sm:$0xf]
    %v83 = vld [vmem:[#allocation5 + $0x18] sm:$0xf]
    %v84 = vld [vmem:[#allocation5 + $0x1c] sm:$0xf]
    %v85 = vld [vmem:[#allocation5 + $0x20] sm:$0xf]
    %v86 = vld [vmem:[#allocation5 + $0x24] sm:$0xf]
    %v87 = vld [vmem:[#allocation5 + $0x28] sm:$0xf]
    %v88 = vld [vmem:[#allocation5 + $0x2c] sm:$0xf]
    %v89 = vld [vmem:[#allocation5 + $0x30] sm:$0xf]
    %v90 = vld [vmem:[#allocation5 + $0x34] sm:$0xf]
    %v91 = vld [vmem:[#allocation5 + $0x38] sm:$0xf]
    %v92 = vld [vmem:[#allocation5 + $0x3c] sm:$0xf]
    %v109 = vunpack.c.l.b16 %v77
    %v110 = vunpack.c.l.b16 %v78
    %v111 = vunpack.c.l.b16 %v79
    %v112 = vunpack.c.l.b16 %v80
    %v113 = vunpack.c.l.b16 %v81
    %v114 = vunpack.c.l.b16 %v82
    %v115 = vunpack.c.l.b16 %v83
    %v116 = vunpack.c.l.b16 %v84
    %v117 = vunpack.c.l.b16 %v85
    %v118 = vunpack.c.l.b16 %v86
    %v119 = vunpack.c.l.b16 %v87
    %v120 = vunpack.c.l.b16 %v88
    %v121 = vunpack.c.l.b16 %v89
    %v122 = vunpack.c.l.b16 %v90
    %v123 = vunpack.c.l.b16 %v91
    %v124 = vunpack.c.l.b16 %v92
    %v125 = vpack.c.b16 %v110, %v109
    %v126 = vpack.c.b16 %v112, %v111
    %v127 = vpack.c.b16 %v114, %v113
    %v128 = vpack.c.b16 %v116, %v115
    %v129 = vpack.c.b16 %v118, %v117
    %v130 = vpack.c.b16 %v120, %v119
    %v131 = vpack.c.b16 %v122, %v121
    %v132 = vpack.c.b16 %v124, %v123
    %141 = vmatprep.subr.bf16.mxu0 0
    %142 = vmatpush1.bf16.xpose.msra.mxu0 %v125
    %143 = vmatprep.subr.bf16.mxu0 0
    %144 = vmatpush1.bf16.xpose.msra.mxu0 %v126
    %145 = vmatprep.subr.bf16.mxu0 0
    %146 = vmatpush1.bf16.xpose.msra.mxu0 %v127
    %147 = vmatprep.subr.bf16.mxu0 0
    %148 = vmatpush1.bf16.xpose.msra.mxu0 %v128
    %149 = vmatprep.subr.bf16.mxu0 0
    %150 = vmatpush1.bf16.xpose.msra.mxu0 %v129
    %151 = vmatprep.subr.bf16.mxu0 0
    %152 = vmatpush1.bf16.xpose.msra.mxu0 %v130
    %153 = vmatprep.subr.bf16.mxu0 0
    %154 = vmatpush1.bf16.xpose.msra.mxu0 %v131
    %155 = vmatprep.subr.bf16.mxu0 0
    %156 = vmatpush1.bf16.xpose.msra.mxu0 %v132
    %157 = vmatprep.subr.bf16.mxu0 0
    %158 = vmatpush1.bf16.xpose.msra.mxu0 0
    %159 = vmatprep.subr.bf16.mxu0 0
    %160 = vmatpush1.bf16.xpose.msra.mxu0 0
    %161 = vmatprep.subr.bf16.mxu0 0
    %162 = vmatpush1.bf16.xpose.msra.mxu0 0
    %163 = vmatprep.subr.bf16.mxu0 0
    %164 = vmatpush1.bf16.xpose.msra.mxu0 0
    %165 = vmatprep.subr.bf16.mxu0 0
    %166 = vmatpush1.bf16.xpose.msra.mxu0 0
    %167 = vmatprep.subr.bf16.mxu0 0
    %168 = vmatpush1.bf16.xpose.msra.mxu0 0
    %169 = vmatprep.subr.bf16.mxu0 0
    %170 = vmatpush1.bf16.xpose.msra.mxu0 0
    %171 = vmatprep.subr.bf16.mxu0 0
    %172 = vmatpush1.bf16.xpose.msra.mxu0 0
    %173 = vmatprep.mubr.bf16.mxu0 0
    %174 = vmatmul.mubr.bf16.gmra.mrb[0].mxu0 %v76
    %v175 = vpop.f32.mrb[0].mxu0
    %v176 = vadd.f32 0.0, %v175
    %v177 = vpop.f32.mrb[0].mxu0
    %v178 = vpop.f32.mrb[0].mxu0
    %v179 = vpop.f32.mrb[0].mxu0
    %180 = vdwg.mxu0
    %v181 = vld [vmem:[#allocation7] sm:$0xf]
    %v182 = vld [vmem:[#allocation7 + $0x4] sm:$0xf]
    %v183 = vld [vmem:[#allocation7 + $0x8] sm:$0xf]
    %v184 = vld [vmem:[#allocation7 + $0xc] sm:$0xf]
    %v185 = vld [vmem:[#allocation7 + $0x10] sm:$0xf]
    %v186 = vld [vmem:[#allocation7 + $0x14] sm:$0xf]
    %v187 = vld [vmem:[#allocation7 + $0x18] sm:$0xf]
    %v188 = vld [vmem:[#allocation7 + $0x1c] sm:$0xf]
    %v189 = vld [vmem:[#allocation7 + $0x20] sm:$0xf]
    %v190 = vld [vmem:[#allocation7 + $0x24] sm:$0xf]
    %v191 = vld [vmem:[#allocation7 + $0x28] sm:$0xf]
    %v192 = vld [vmem:[#allocation7 + $0x2c] sm:$0xf]
    %v193 = vld [vmem:[#allocation7 + $0x30] sm:$0xf]
    %v194 = vld [vmem:[#allocation7 + $0x34] sm:$0xf]
    %v195 = vld [vmem:[#allocation7 + $0x38] sm:$0xf]
    %v196 = vld [vmem:[#allocation7 + $0x3c] sm:$0xf]
    %v213 = vunpack.c.l.b16 %v181
    %v214 = vunpack.c.l.b16 %v182
    %v215 = vunpack.c.l.b16 %v183
    %v216 = vunpack.c.l.b16 %v184
    %v217 = vunpack.c.l.b16 %v185
    %v218 = vunpack.c.l.b16 %v186
    %v219 = vunpack.c.l.b16 %v187
    %v220 = vunpack.c.l.b16 %v188
    %v221 = vunpack.c.l.b16 %v189
    %v222 = vunpack.c.l.b16 %v190
    %v223 = vunpack.c.l.b16 %v191
    %v224 = vunpack.c.l.b16 %v192
    %v225 = vunpack.c.l.b16 %v193
    %v226 = vunpack.c.l.b16 %v194
    %v227 = vunpack.c.l.b16 %v195
    %v228 = vunpack.c.l.b16 %v196
    %v229 = vpack.c.b16 %v214, %v213
    %v230 = vpack.c.b16 %v216, %v215
    %v231 = vpack.c.b16 %v218, %v217
    %v232 = vpack.c.b16 %v220, %v219
    %v233 = vpack.c.b16 %v222, %v221
    %v234 = vpack.c.b16 %v224, %v223
    %v235 = vpack.c.b16 %v226, %v225
    %v236 = vpack.c.b16 %v228, %v227
    %245 = vmatprep.subr.bf16.mxu0 0
    %246 = vmatpush1.bf16.xpose.msra.mxu0 %v229
    %247 = vmatprep.subr.bf16.mxu0 0
    %248 = vmatpush1.bf16.xpose.msra.mxu0 %v230
    %249 = vmatprep.subr.bf16.mxu0 0
    %250 = vmatpush1.bf16.xpose.msra.mxu0 %v231
    %251 = vmatprep.subr.bf16.mxu0 0
    %252 = vmatpush1.bf16.xpose.msra.mxu0 %v232
    %253 = vmatprep.subr.bf16.mxu0 0
    %254 = vmatpush1.bf16.xpose.msra.mxu0 %v233
    %255 = vmatprep.subr.bf16.mxu0 0
    %256 = vmatpush1.bf16.xpose.msra.mxu0 %v234
    %257 = vmatprep.subr.bf16.mxu0 0
    %258 = vmatpush1.bf16.xpose.msra.mxu0 %v235
    %259 = vmatprep.subr.bf16.mxu0 0
    %260 = vmatpush1.bf16.xpose.msra.mxu0 %v236
    %261 = vmatprep.subr.bf16.mxu0 0
    %262 = vmatpush1.bf16.xpose.msra.mxu0 0
    %263 = vmatprep.subr.bf16.mxu0 0
    %264 = vmatpush1.bf16.xpose.msra.mxu0 0
    %265 = vmatprep.subr.bf16.mxu0 0
    %266 = vmatpush1.bf16.xpose.msra.mxu0 0
    %267 = vmatprep.subr.bf16.mxu0 0
    %268 = vmatpush1.bf16.xpose.msra.mxu0 0
    %269 = vmatprep.subr.bf16.mxu0 0
    %270 = vmatpush1.bf16.xpose.msra.mxu0 0
    %271 = vmatprep.subr.bf16.mxu0 0
    %272 = vmatpush1.bf16.xpose.msra.mxu0 0
    %273 = vmatprep.subr.bf16.mxu0 0
    %274 = vmatpush1.bf16.xpose.msra.mxu0 0
    %275 = vmatprep.subr.bf16.mxu0 0
    %276 = vmatpush1.bf16.xpose.msra.mxu0 0
    %277 = vmatprep.mubr.bf16.mxu0 0
    %278 = vmatmul.mubr.bf16.gmra.mrb[0].mxu0 %v76
    %v279 = vpop.f32.mrb[0].mxu0
    %v280 = vadd.f32 0.0, %v279
    %v281 = vpop.f32.mrb[0].mxu0
    %v282 = vpop.f32.mrb[0].mxu0
    %v283 = vpop.f32.mrb[0].mxu0
    %284 = vdwg.mxu0
    %v285 = vld [vmem:[#allocation8] sm:$0xf]
    %v286 = vld [vmem:[#allocation8 + $0x4] sm:$0xf]
    %v287 = vld [vmem:[#allocation8 + $0x8] sm:$0xf]
    %v288 = vld [vmem:[#allocation8 + $0xc] sm:$0xf]
    %v289 = vld [vmem:[#allocation8 + $0x10] sm:$0xf]
    %v290 = vld [vmem:[#allocation8 + $0x14] sm:$0xf]
    %v291 = vld [vmem:[#allocation8 + $0x18] sm:$0xf]
    %v292 = vld [vmem:[#allocation8 + $0x1c] sm:$0xf]
    %v293 = vld [vmem:[#allocation8 + $0x20] sm:$0xf]
    %v294 = vld [vmem:[#allocation8 + $0x24] sm:$0xf]
    %v295 = vld [vmem:[#allocation8 + $0x28] sm:$0xf]
    %v296 = vld [vmem:[#allocation8 + $0x2c] sm:$0xf]
    %v297 = vld [vmem:[#allocation8 + $0x30] sm:$0xf]
    %v298 = vld [vmem:[#allocation8 + $0x34] sm:$0xf]
    %v299 = vld [vmem:[#allocation8 + $0x38] sm:$0xf]
    %v300 = vld [vmem:[#allocation8 + $0x3c] sm:$0xf]
    %v317 = vunpack.c.l.b16 %v285
    %v318 = vunpack.c.l.b16 %v286
    %v319 = vunpack.c.l.b16 %v287
    %v320 = vunpack.c.l.b16 %v288
    %v321 = vunpack.c.l.b16 %v289
    %v322 = vunpack.c.l.b16 %v290
    %v323 = vunpack.c.l.b16 %v291
    %v324 = vunpack.c.l.b16 %v292
    %v325 = vunpack.c.l.b16 %v293
    %v326 = vunpack.c.l.b16 %v294
    %v327 = vunpack.c.l.b16 %v295
    %v328 = vunpack.c.l.b16 %v296
    %v329 = vunpack.c.l.b16 %v297
    %v330 = vunpack.c.l.b16 %v298
    %v331 = vunpack.c.l.b16 %v299
    %v332 = vunpack.c.l.b16 %v300
    %v333 = vpack.c.b16 %v318, %v317
    %v334 = vpack.c.b16 %v320, %v319
    %v335 = vpack.c.b16 %v322, %v321
    %v336 = vpack.c.b16 %v324, %v323
    %v337 = vpack.c.b16 %v326, %v325
    %v338 = vpack.c.b16 %v328, %v327
    %v339 = vpack.c.b16 %v330, %v329
    %v340 = vpack.c.b16 %v332, %v331
    %349 = vmatprep.subr.bf16.mxu0 0
    %350 = vmatpush1.bf16.xpose.msra.mxu0 %v333
    %351 = vmatprep.subr.bf16.mxu0 0
    %352 = vmatpush1.bf16.xpose.msra.mxu0 %v334
    %353 = vmatprep.subr.bf16.mxu0 0
    %354 = vmatpush1.bf16.xpose.msra.mxu0 %v335
    %355 = vmatprep.subr.bf16.mxu0 0
    %356 = vmatpush1.bf16.xpose.msra.mxu0 %v336
    %357 = vmatprep.subr.bf16.mxu0 0
    %358 = vmatpush1.bf16.xpose.msra.mxu0 %v337
    %359 = vmatprep.subr.bf16.mxu0 0
    %360 = vmatpush1.bf16.xpose.msra.mxu0 %v338
    %361 = vmatprep.subr.bf16.mxu0 0
    %362 = vmatpush1.bf16.xpose.msra.mxu0 %v339
    %363 = vmatprep.subr.bf16.mxu0 0
    %364 = vmatpush1.bf16.xpose.msra.mxu0 %v340
    %365 = vmatprep.subr.bf16.mxu0 0
    %366 = vmatpush1.bf16.xpose.msra.mxu0 0
    %367 = vmatprep.subr.bf16.mxu0 0
    %368 = vmatpush1.bf16.xpose.msra.mxu0 0
    %369 = vmatprep.subr.bf16.mxu0 0
    %370 = vmatpush1.bf16.xpose.msra.mxu0 0
    %371 = vmatprep.subr.bf16.mxu0 0
    %372 = vmatpush1.bf16.xpose.msra.mxu0 0
    %373 = vmatprep.subr.bf16.mxu0 0
    %374 = vmatpush1.bf16.xpose.msra.mxu0 0
    %375 = vmatprep.subr.bf16.mxu0 0
    %376 = vmatpush1.bf16.xpose.msra.mxu0 0
    %377 = vmatprep.subr.bf16.mxu0 0
    %378 = vmatpush1.bf16.xpose.msra.mxu0 0
    %379 = vmatprep.subr.bf16.mxu0 0
    %380 = vmatpush1.bf16.xpose.msra.mxu0 0
    %381 = vmatprep.mubr.bf16.mxu0 0
    %382 = vmatmul.mubr.bf16.gmra.mrb[0].mxu0 %v76
    %v383 = vpop.f32.mrb[0].mxu0
    %v384 = vadd.f32 0.0, %v383
    %v385 = vpop.f32.mrb[0].mxu0
    %v386 = vpop.f32.mrb[0].mxu0
    %v387 = vpop.f32.mrb[0].mxu0
    %388 = vdwg.mxu0
    %v389 = vmul.f32 %v176, 0.25
    %v390 = vpack.c.bf16 %v389, %v389
    %391 = vst [vmem:[#allocation10] sm:$0xf] %v390
    %v392 = vpack.c.bf16 %v280, %v280
    %393 = vst [vmem:[#allocation11] sm:$0xf] %v392
    %v394 = vpack.c.bf16 %v384, %v384
    %395 = vst [vmem:[#allocation13] sm:$0xf] %v394
    // Predicated region
    $region34: #{tpu_custom_call.1} parent=1 // pred_check
      _
    $region35: #{tpu_custom_call.1} parent=1 // pred_check_branch
      %397 = sbr.rel (0) target = $region37
    $region36: #{tpu_custom_call.1} parent=1 // pred_region
      %s399 = ssub.s32 64, 64
      %400 = vsyncadd [#allocation4], %s399
      %s402 = sshll.u32 [#allocation10], 4
      %s403 = int_to_ptr.vmem [resolvable:$true] %s402
      %405 = dma.vmem_to_hbm [thread:$0]  %s403, 64, %s4, [#allocation4]
    $region37: #{tpu_custom_call.1} parent=1 // pred_fallthru
      _
    // Predicated region
    $region38: #{tpu_custom_call.1} parent=1 // pred_check
      _
    $region39: #{tpu_custom_call.1} parent=1 // pred_check_branch
      %407 = sbr.rel (0) target = $region41
    $region40: #{tpu_custom_call.1} parent=1 // pred_region
      %s409 = ssub.s32 64, 64
      %410 = vsyncadd [#allocation12], %s409
      %s412 = sshll.u32 [#allocation11], 4
      %s413 = int_to_ptr.vmem [resolvable:$true] %s412
      %415 = dma.vmem_to_hbm [thread:$0]  %s413, 64, %s5, [#allocation12]
    $region41: #{tpu_custom_call.1} parent=1 // pred_fallthru
      _
    // Predicated region
    $region42: #{tpu_custom_call.1} parent=1 // pred_check
      _
    $region43: #{tpu_custom_call.1} parent=1 // pred_check_branch
      %417 = sbr.rel (0) target = $region45
    $region44: #{tpu_custom_call.1} parent=1 // pred_region
      %s419 = ssub.s32 64, 64
      %420 = vsyncadd [#allocation12], %s419
      %s422 = sshll.u32 [#allocation13], 4
      %s423 = int_to_ptr.vmem [resolvable:$true] %s422
      %425 = dma.vmem_to_hbm [thread:$0]  %s423, 64, %s6, [#allocation12]
    $region45: #{tpu_custom_call.1} parent=1 // pred_fallthru
      _
    // Predicated region
    $region46: #{tpu_custom_call.1} parent=1 // pred_check
      _
    $region47: #{tpu_custom_call.1} parent=1 // pred_check_branch
      %427 = sbr.rel (0) target = $region49
    $region48: #{tpu_custom_call.1} parent=1 // pred_region
      %428 = dma.done [#allocation4], 64
    $region49: #{tpu_custom_call.1} parent=1 // pred_fallthru
      _
    // Predicated region
    $region50: #{tpu_custom_call.1} parent=1 // pred_check
      _
    $region51: #{tpu_custom_call.1} parent=1 // pred_check_branch
      %430 = sbr.rel (0) target = $region53
    $region52: #{tpu_custom_call.1} parent=1 // pred_region
      %431 = dma.done [#allocation12], 64
    $region53: #{tpu_custom_call.1} parent=1 // pred_fallthru
      _
    // Predicated region
    $region54: #{tpu_custom_call.1} parent=1 // pred_check
      _
    $region55: #{tpu_custom_call.1} parent=1 // pred_check_branch
      %433 = sbr.rel (0) target = $region57
    $region56: #{tpu_custom_call.1} parent=1 // pred_region
      %434 = dma.done [#allocation12], 64
    $region57: #{tpu_custom_call.1} parent=1 // pred_fallthru
      _
    %435 = vsyncpa [#allocation3], 1
    %436 = vsyncpa [#allocation6], 1
    %437 = vsyncpa [#allocation9], 1
    %438 = vsyncpa [#allocation4], 1
    %439 = vsyncpa [#allocation12], 1

</llo_original>
